<compile_context>
chip_gen: v5e
topology: v5e:2x2
jax: 0.10.0
libtpu: 0.0.40
codegen_flags: <defaults>
</compile_context>

<pallas_src>
from functools import partial

import jax
import jax.numpy as jnp
from jax import lax
from jax.experimental import pallas as pl
from jax.experimental.pallas import tpu as pltpu


def _linear_model_kernel(x_ref, wt_ref, b_ref, pred_ref, tgt_ref, *,
                         inv_c, bin_size, n_bins):
    # x_ref:   (TB, C, T)        f32 VMEM  (TB batch rows)
    # wt_ref:  (bin_size, bin_size) f32 VMEM  (W.T: in-features on rows)
    # b_ref:   (1, bin_size)     f32 VMEM
    # pred_ref, tgt_ref: (TB, pre_len) f32 VMEM (lane-dense output slabs)
    t_trunc = n_bins * bin_size
    pre_len = t_trunc - bin_size
    nb1 = n_bins - 1

    x = x_ref[...]                                   # (TB, C, T)
    # Channel mean as vector adds + one scalar-constant multiply.
    xm = jnp.sum(x, axis=1) * inv_c                  # (TB, T)
    tb = xm.shape[0]

    # target = bins [1, n_bins-1], flattened on lanes; one dense store.
    tgt_ref[...] = xm[:, bin_size:t_trunc].astype(tgt_ref.dtype)

    # Stack bins [0, n_bins-2] along the sublane axis -> (nb1*TB, bin_size),
    # via static lane slices + concat (robust Mosaic lowering; equivalent to a
    # reshape of the lane axis).
    src2 = jnp.concatenate(
        [xm[:, n * bin_size:(n + 1) * bin_size] for n in range(nb1)], axis=0)

    # Single MXU matmul against the shared small weight, f32-accurate.
    pred2 = jnp.dot(src2, wt_ref[...],
                    preferred_element_type=jnp.float32,
                    precision=lax.Precision.HIGHEST)
    pred2 = pred2 + b_ref[...]                       # bias broadcast over rows

    # Un-stack back to a lane-dense (TB, pre_len) slab for one dense store.
    pred = jnp.concatenate(
        [pred2[n * tb:(n + 1) * tb, :] for n in range(nb1)], axis=1)
    pred_ref[...] = pred.astype(pred_ref.dtype)


def linear_model_forward(x, weight, bias, bin_size):
    """x: (B, C, T) f32. weight: (bin_size, bin_size) torch layout (out, in).
    Returns (pred, target), each (B, n_bins-1, bin_size)."""
    B, C, T = x.shape
    n_bins = T // bin_size
    assert n_bins >= 2, "need at least 2 bins to form (pred, target) pairs"
    t_trunc = n_bins * bin_size
    pre_len = (n_bins - 1) * bin_size
    inv_c = 1.0 / C

    # --- batch tiling: TB rows per grid step, sized against a VMEM budget ---
    # per-row cost: 2x double-buffered input block + 2x double-buffered outputs
    # + in-kernel f32 temporaries (mean / stacked operand / result).
    budget_bytes = 8 * 1024 * 1024
    bytes_per_row = 4 * (2 * C * T + 4 * pre_len + 3 * T)
    tb_cap = max(8, (budget_bytes // bytes_per_row) // 8 * 8)
    if B <= tb_cap:
        TB, B_pad = B, B                     # toy shapes: single grid step
    else:
        TB = tb_cap                          # multiple of 8 (f32 sublane)
        B_pad = pl.cdiv(B, TB) * TB
    x_in = x if B_pad == B else jnp.pad(x, ((0, B_pad - B), (0, 0), (0, 0)))
    num_steps = B_pad // TB

    wt = weight.T                            # (bin_size, bin_size), tiny
    b2 = bias.reshape(1, bin_size)

    kernel = partial(_linear_model_kernel,
                     inv_c=inv_c, bin_size=bin_size, n_bins=n_bins)

    grid_spec = pltpu.PrefetchScalarGridSpec(
        num_scalar_prefetch=0,
        grid=(num_steps,),
        in_specs=[
            pl.BlockSpec((TB, C, T), lambda b: (b, 0, 0)),
            # weight / bias: same (tiny) block every step -> stays resident
            pl.BlockSpec((bin_size, bin_size), lambda b: (0, 0)),
            pl.BlockSpec((1, bin_size), lambda b: (0, 0)),
        ],
        out_specs=[
            pl.BlockSpec((TB, pre_len), lambda b: (b, 0)),
            pl.BlockSpec((TB, pre_len), lambda b: (b, 0)),
        ],
    )

    pred_flat, tgt_flat = pl.pallas_call(
        kernel,
        out_shape=(
            jax.ShapeDtypeStruct((B_pad, pre_len), jnp.float32),
            jax.ShapeDtypeStruct((B_pad, pre_len), jnp.float32),
        ),
        grid_spec=grid_spec,
        compiler_params=pltpu.CompilerParams(
            dimension_semantics=("parallel",),        # shard batch on v7x TCs
            vmem_limit_bytes=32 * 1024 * 1024,
        ),
    )(x_in, wt, b2)

    # Free unflatten (and un-pad) back to the module's output layout.
    pred = pred_flat[:B].reshape(B, n_bins - 1, bin_size)
    tgt = tgt_flat[:B].reshape(B, n_bins - 1, bin_size)
    return pred, tgt


def _reference(x, weight, bias, bin_size):
    xm = jnp.mean(x, axis=1)
    n_bins = xm.shape[1] // bin_size
    xb = xm[:, : n_bins * bin_size].reshape(x.shape[0], n_bins, bin_size)
    pred = jnp.einsum("bnd,od->bno", xb[:, :-1, :], weight,
                      precision=lax.Precision.HIGHEST) + bias
    return pred, xb[:, 1:, :]


if __name__ == "__main__":
    bin_size = 16
    B, C, T = 2, 4, 70   # T=70 -> truncated to 4 bins of 16

    key = jax.random.PRNGKey(0)
    kx, kw, kb = jax.random.split(key, 3)

    x = jax.random.normal(kx, (B, C, T), dtype=jnp.float32)

    # Deterministic nn.Linear-style init: U(-1/sqrt(in), 1/sqrt(in))
    bound = 1.0 / (bin_size ** 0.5)
    weight = jax.random.uniform(
        kw, (bin_size, bin_size), minval=-bound, maxval=bound, dtype=jnp.float32)
    bias = jax.random.uniform(
        kb, (bin_size,), minval=-bound, maxval=bound, dtype=jnp.float32)

    fwd = jax.jit(partial(linear_model_forward, bin_size=bin_size))
    pred, tgt = fwd(x, weight, bias)
    jax.block_until_ready((pred, tgt))

    pred_ref, tgt_ref = _reference(x, weight, bias, bin_size)
    assert pred.shape == (B, 3, bin_size) and tgt.shape == (B, 3, bin_size)
    assert jnp.allclose(pred, pred_ref, atol=2e-5, rtol=2e-5), "pred mismatch"
    assert jnp.allclose(tgt, tgt_ref, atol=1e-5, rtol=1e-5), "target mismatch"

    print("KERNEL_OK")
</pallas_src>

<mosaic_0001>
module attributes {stable_mosaic.version = 11 : i64} {
  func.func @_linear_model_kernel(%arg0: i32, %arg1: memref<2x4x70xf32, #tpu.memory_space<vmem>>, %arg2: memref<16x16xf32, #tpu.memory_space<vmem>>, %arg3: memref<1x16xf32, #tpu.memory_space<vmem>>, %arg4: memref<2x48xf32, #tpu.memory_space<vmem>>, %arg5: memref<2x48xf32, #tpu.memory_space<vmem>>) attributes {dimension_semantics = [#tpu.dimension_semantics<parallel>], iteration_bounds = array<i64: 1>, scalar_prefetch = 0 : i64, scratch_operands = 0 : i64, tpu.core_type = #tpu.core_type<tc>, window_params = [{transform_indices = @transform_0, window_bounds = array<i64: 2, 4, 70>}, {pipeline_mode = #tpu.pipeline_mode<synchronous>, transform_indices = @transform_1, window_bounds = array<i64: 16, 16>}, {pipeline_mode = #tpu.pipeline_mode<synchronous>, transform_indices = @transform_2, window_bounds = array<i64: 1, 16>}, {transform_indices = @transform_3, window_bounds = array<i64: 2, 48>}, {transform_indices = @transform_4, window_bounds = array<i64: 2, 48>}]} {
    %c0 = arith.constant 0 : index
    %c0_0 = arith.constant 0 : index
    %c0_1 = arith.constant 0 : index
    %0 = vector.load %arg1[%c0, %c0_0, %c0_1] : memref<2x4x70xf32, #tpu.memory_space<vmem>>, vector<2x4x70xf32>
    %cst = arith.constant dense<0.000000e+00> : vector<2x70xf32>
    %1 = vector.multi_reduction <add>, %0, %cst [1] : vector<2x4x70xf32> to vector<2x70xf32>
    %cst_2 = arith.constant 2.500000e-01 : f32
    %2 = vector.broadcast %cst_2 : f32 to vector<2x70xf32>
    %3 = arith.mulf %1, %2 : vector<2x70xf32>
    %4 = vector.extract_strided_slice %3 {offsets = [0, 16], sizes = [2, 48], strides = [1, 1]} : vector<2x70xf32> to vector<2x48xf32>
    %c0_3 = arith.constant 0 : index
    %c0_4 = arith.constant 0 : index
    %5 = vector.load %arg5[%c0_3, %c0_4] : memref<2x48xf32, #tpu.memory_space<vmem>>, vector<2x48xf32>
    tpu.vector_store %arg5[%c0_3, %c0_4], %4 {strides = array<i32>} : memref<2x48xf32, #tpu.memory_space<vmem>>, vector<2x48xf32>,
    %6 = vector.extract_strided_slice %3 {offsets = [0, 0], sizes = [2, 16], strides = [1, 1]} : vector<2x70xf32> to vector<2x16xf32>
    %7 = vector.extract_strided_slice %3 {offsets = [0, 16], sizes = [2, 16], strides = [1, 1]} : vector<2x70xf32> to vector<2x16xf32>
    %8 = vector.extract_strided_slice %3 {offsets = [0, 32], sizes = [2, 16], strides = [1, 1]} : vector<2x70xf32> to vector<2x16xf32>
    %9 = tpu.concatenate %6, %7, %8 in 0 : vector<2x16xf32>, vector<2x16xf32>, vector<2x16xf32> -> vector<6x16xf32>
    %c0_5 = arith.constant 0 : index
    %c0_6 = arith.constant 0 : index
    %10 = vector.load %arg2[%c0_5, %c0_6] : memref<16x16xf32, #tpu.memory_space<vmem>>, vector<16x16xf32>
    %cst_7 = arith.constant dense<0.000000e+00> : vector<6x16xf32>
    %11 = tpu.matmul %9, %10, %cst_7 {dimension_numbers = #tpu.dot_dimension_numbers<[1], [0], [0], [1], [0, 0, 1, 1], [], []>, precision = #tpu.contract_precision<fp32>} : vector<6x16xf32>, vector<16x16xf32>, vector<6x16xf32> -> vector<6x16xf32>
    %c0_8 = arith.constant 0 : index
    %c0_9 = arith.constant 0 : index
    %12 = vector.load %arg3[%c0_8, %c0_9] : memref<1x16xf32, #tpu.memory_space<vmem>>, vector<1x16xf32>
    %13 = vector.broadcast %12 : vector<1x16xf32> to vector<6x16xf32>
    %14 = arith.addf %11, %13 : vector<6x16xf32>
    %15 = vector.extract_strided_slice %14 {offsets = [0, 0], sizes = [2, 16], strides = [1, 1]} : vector<6x16xf32> to vector<2x16xf32>
    %16 = vector.extract_strided_slice %14 {offsets = [2, 0], sizes = [2, 16], strides = [1, 1]} : vector<6x16xf32> to vector<2x16xf32>
    %17 = vector.extract_strided_slice %14 {offsets = [4, 0], sizes = [2, 16], strides = [1, 1]} : vector<6x16xf32> to vector<2x16xf32>
    %18 = tpu.concatenate %15, %16, %17 in 1 : vector<2x16xf32>, vector<2x16xf32>, vector<2x16xf32> -> vector<2x48xf32>
    %c0_10 = arith.constant 0 : index
    %c0_11 = arith.constant 0 : index
    %19 = vector.load %arg4[%c0_10, %c0_11] : memref<2x48xf32, #tpu.memory_space<vmem>>, vector<2x48xf32>
    tpu.vector_store %arg4[%c0_10, %c0_11], %18 {strides = array<i32>} : memref<2x48xf32, #tpu.memory_space<vmem>>, vector<2x48xf32>,
    return
  }
  func.func @transform_0(%arg0: i32) -> (i32, i32, i32) {
    %c0_i32 = arith.constant 0 : i32
    %c0_i32_0 = arith.constant 0 : i32
    %c0_i32_1 = arith.constant 0 : i32
    return %arg0, %c0_i32, %c0_i32_0 : i32, i32, i32
  }
  func.func @transform_1(%arg0: i32) -> (i32, i32) {
    %c0_i32 = arith.constant 0 : i32
    %c0_i32_0 = arith.constant 0 : i32
    %c0_i32_1 = arith.constant 0 : i32
    return %c0_i32, %c0_i32_0 : i32, i32
  }
  func.func @transform_2(%arg0: i32) -> (i32, i32) {
    %c0_i32 = arith.constant 0 : i32
    %c0_i32_0 = arith.constant 0 : i32
    %c0_i32_1 = arith.constant 0 : i32
    return %c0_i32, %c0_i32_0 : i32, i32
  }
  func.func @transform_3(%arg0: i32) -> (i32, i32) {
    %c0_i32 = arith.constant 0 : i32
    %c0_i32_0 = arith.constant 0 : i32
    return %arg0, %c0_i32 : i32, i32
  }
  func.func @transform_4(%arg0: i32) -> (i32, i32) {
    %c0_i32 = arith.constant 0 : i32
    %c0_i32_0 = arith.constant 0 : i32
    return %arg0, %c0_i32 : i32, i32
  }
}

</mosaic_0001>

<llo_original>
// kernel: linear_model_forward.1
$region0: #{linear_model_forward.1}
  #allocation0 [shape = 'u32[]', space=smem, size = 0x4, offset = 0x4, fixed_abs, tag = 'smem constant byte address 0x4 - core index']
  #allocation1 [shape = 'u32[72,128]{1,0:T(1,128)}', space=vmem, size = 0x9000, scoped, tag = 'internal scratch']
  %s0 = inlined_call_operand.vmem [shape: f32[2,4,70], index: 0, kind: input, shape index: {}]
  %s1 = inlined_call_operand.vmem [shape: f32[16,16], index: 1, kind: input, shape index: {}]
  %s2 = inlined_call_operand.vmem [shape: f32[1,16], index: 2, kind: input, shape index: {}]
  %s3 = inlined_call_operand.vmem [shape: f32[2,48], index: 3, kind: output, shape index: {0}]
  %s4 = inlined_call_operand.vmem [shape: f32[2,48], index: 4, kind: output, shape index: {1}]
  %5 = xla_tuple %s3, %s4
  %s6 = sld [smem:[#allocation0]]
  $region30: #{linear_model_forward.1} parent=0
    _
  %s8 = ssub.s32 1, %s6
  %s9 = scalar_select 0, %s8, %s6
  // Predicated region
  $region2: #{linear_model_forward.1} parent=0 // pred_check
    _
  $region3: #{linear_model_forward.1} parent=0 // pred_check_branch
    %11 = sbr.rel (0) target = $region5
  $region4: #{linear_model_forward.1} parent=0 // pred_region
    _
  $region5: #{linear_model_forward.1} parent=0 // pred_fallthru
    _
  // Predicated region
  $region6: #{linear_model_forward.1} parent=0 // pred_check
    _
  $region7: #{linear_model_forward.1} parent=0 // pred_check_branch
    %13 = sbr.rel (0) target = $region9
  $region8: #{linear_model_forward.1} parent=0 // pred_region
    _
  $region9: #{linear_model_forward.1} parent=0 // pred_fallthru
    _
  // Predicated region
  $region10: #{linear_model_forward.1} parent=0 // pred_check
    _
  $region11: #{linear_model_forward.1} parent=0 // pred_check_branch
    %15 = sbr.rel (0) target = $region13
  $region12: #{linear_model_forward.1} parent=0 // pred_region
    _
  $region13: #{linear_model_forward.1} parent=0 // pred_fallthru
    _
  %v16 = vld [vmem:[%s0] sm:$0xf]
  %v17 = vld [vmem:[%s0 + $0x4] sm:$0xf]
  %vm18 = vcmask 568320
  %v19 = vsel %vm18, %v16, 0.0
  %v20 = vrot.slane %v19, 4
  %v21 = vadd.f32 %v19, %v20
  %v22 = vrot.slane %v21, 2
  %v23 = vadd.f32 %v21, %v22
  %v24 = vrot.slane %v23, 1
  %v25 = vadd.f32 %v23, %v24
  %v26 = vsel %vm18, %v17, 0.0
  %v27 = vrot.slane %v26, 4
  %v28 = vadd.f32 %v26, %v27
  %v29 = vrot.slane %v28, 2
  %v30 = vadd.f32 %v28, %v29
  %v31 = vrot.slane %v30, 1
  %v32 = vadd.f32 %v30, %v31
  %v33 = vmul.f32 %v25, 0.25
  %v34 = vmul.f32 %v32, 0.25
  %vm37 = vcmask 1041409
  %v38 = vsel %vm37, %v34, %v33
  %39 = vrot.lane.b32.xlu0 %v38, 112
  %v40 = vpop.permute.xlu0 %39
  %vm42 = vcmask 386048
  %43 = vst.msk [vmem:[%s4] sm:$0x3] %vm42, %v40
  %vm45 = vcmask 1043459
  %v46 = vsel %vm45, %v34, %v33
  %47 = vrot.lane.b32.xlu0 %v46, 112
  %v48 = vpop.permute.xlu0 %47
  %vm50 = vcmask 1045509
  %v51 = vsel %vm50, %v34, %v33
  %52 = vrot.lane.b32.xlu0 %v51, 96
  %v53 = vpop.permute.xlu0 %52
  %vm55 = vcmask 1041408
  %v56 = vsel %vm55, %v38, %v48
  %vm57 = vcmask 1043456
  %v58 = vsel %vm57, %v56, %v53
  %v59 = vld [vmem:[%s1] sm:$0xff]
  %v60 = vld [vmem:[%s1 + $0x8] sm:$0xff]
  %v61 = vld [vmem:[%s2] sm:$0x1]
  %v63 = vperm.slane %v61, 0
  %vm65 = vcmask 130048
  %v67 = vsel %vm65, %v58, 0
  %69 = vmatpush.msra.mxu0 0.0
  %70 = vmatpush.msra.mxu0 0.0
  %71 = vmatpush.msra.mxu0 0.0
  %72 = vmatpush.msra.mxu0 0.0
  %73 = vmatpush.msra.mxu0 0.0
  %74 = vmatpush.msra.mxu0 0.0
  %75 = vmatpush.msra.mxu0 0.0
  %76 = vmatpush.msra.mxu0 0.0
  %77 = vmatpush.msra.mxu0 0.0
  %78 = vmatpush.msra.mxu0 0.0
  %79 = vmatpush.msra.mxu0 0.0
  %80 = vmatpush.msra.mxu0 0.0
  %81 = vmatpush.msra.mxu0 0.0
  %82 = vmatpush.msra.mxu0 0.0
  %v83 = vand.u32 %v60, 4294901760
  %84 = vmatpush.msra.mxu0 %v83
  %v85 = vand.u32 %v59, 4294901760
  %86 = vmatpush.msra.mxu0 %v85
  %v87 = vand.u32 %v67, 4294901760
  %v88 = vsub.f32 %v67, %v87
  %v89 = vand.u32 %v88, 4294901760
  %v90 = vsub.f32 %v88, %v89
  %v91 = vand.u32 %v90, 4294901760
  %92 = vmatmul.f32.gmra.mxu0 %v91
  %v93 = vpop.f32.mrf.mxu0
  %v94 = vadd.f32 %v63, %v93
  %95 = vdwg.mxu0
  %96 = vmatpush.msra.mxu0 0.0
  %97 = vmatpush.msra.mxu0 0.0
  %98 = vmatpush.msra.mxu0 0.0
  %99 = vmatpush.msra.mxu0 0.0
  %100 = vmatpush.msra.mxu0 0.0
  %101 = vmatpush.msra.mxu0 0.0
  %102 = vmatpush.msra.mxu0 0.0
  %103 = vmatpush.msra.mxu0 0.0
  %104 = vmatpush.msra.mxu0 0.0
  %105 = vmatpush.msra.mxu0 0.0
  %106 = vmatpush.msra.mxu0 0.0
  %107 = vmatpush.msra.mxu0 0.0
  %108 = vmatpush.msra.mxu0 0.0
  %109 = vmatpush.msra.mxu0 0.0
  %v110 = vand.u32 %v60, 4294901760
  %v111 = vsub.f32 %v60, %v110
  %v112 = vand.u32 %v111, 4294901760
  %v113 = vsub.f32 %v111, %v112
  %v114 = vand.u32 %v113, 4294901760
  %115 = vmatpush.msra.mxu0 %v114
  %v116 = vand.u32 %v59, 4294901760
  %v117 = vsub.f32 %v59, %v116
  %v118 = vand.u32 %v117, 4294901760
  %v119 = vsub.f32 %v117, %v118
  %v120 = vand.u32 %v119, 4294901760
  %121 = vmatpush.msra.mxu0 %v120
  %v122 = vand.u32 %v67, 4294901760
  %123 = vmatmul.f32.gmra.mxu0 %v122
  %v124 = vpop.f32.mrf.mxu0
  %v125 = vadd.f32 %v94, %v124
  %126 = vdwg.mxu0
  %127 = vmatpush.msra.mxu0 0.0
  %128 = vmatpush.msra.mxu0 0.0
  %129 = vmatpush.msra.mxu0 0.0
  %130 = vmatpush.msra.mxu0 0.0
  %131 = vmatpush.msra.mxu0 0.0
  %132 = vmatpush.msra.mxu0 0.0
  %133 = vmatpush.msra.mxu0 0.0
  %134 = vmatpush.msra.mxu0 0.0
  %135 = vmatpush.msra.mxu0 0.0
  %136 = vmatpush.msra.mxu0 0.0
  %137 = vmatpush.msra.mxu0 0.0
  %138 = vmatpush.msra.mxu0 0.0
  %139 = vmatpush.msra.mxu0 0.0
  %140 = vmatpush.msra.mxu0 0.0
  %v141 = vand.u32 %v60, 4294901760
  %v142 = vsub.f32 %v60, %v141
  %143 = vmatpush.msra.mxu0 %v142
  %v144 = vand.u32 %v59, 4294901760
  %v145 = vsub.f32 %v59, %v144
  %146 = vmatpush.msra.mxu0 %v145
  %v147 = vand.u32 %v67, 4294901760
  %v148 = vsub.f32 %v67, %v147
  %149 = vmatmul.f32.gmra.mxu0 %v148
  %v150 = vpop.f32.mrf.mxu0
  %v151 = vadd.f32 %v125, %v150
  %152 = vdwg.mxu0
  %153 = vmatpush.msra.mxu0 0.0
  %154 = vmatpush.msra.mxu0 0.0
  %155 = vmatpush.msra.mxu0 0.0
  %156 = vmatpush.msra.mxu0 0.0
  %157 = vmatpush.msra.mxu0 0.0
  %158 = vmatpush.msra.mxu0 0.0
  %159 = vmatpush.msra.mxu0 0.0
  %160 = vmatpush.msra.mxu0 0.0
  %161 = vmatpush.msra.mxu0 0.0
  %162 = vmatpush.msra.mxu0 0.0
  %163 = vmatpush.msra.mxu0 0.0
  %164 = vmatpush.msra.mxu0 0.0
  %165 = vmatpush.msra.mxu0 0.0
  %166 = vmatpush.msra.mxu0 0.0
  %v167 = vand.u32 %v60, 4294901760
  %168 = vmatpush.msra.mxu0 %v167
  %v169 = vand.u32 %v59, 4294901760
  %170 = vmatpush.msra.mxu0 %v169
  %v171 = vand.u32 %v67, 4294901760
  %v172 = vsub.f32 %v67, %v171
  %v173 = vand.u32 %v172, 4294901760
  %174 = vmatmul.f32.gmra.mxu0 %v173
  %v175 = vpop.f32.mrf.mxu0
  %v176 = vadd.f32 %v151, %v175
  %177 = vdwg.mxu0
  %178 = vmatpush.msra.mxu0 0.0
  %179 = vmatpush.msra.mxu0 0.0
  %180 = vmatpush.msra.mxu0 0.0
  %181 = vmatpush.msra.mxu0 0.0
  %182 = vmatpush.msra.mxu0 0.0
  %183 = vmatpush.msra.mxu0 0.0
  %184 = vmatpush.msra.mxu0 0.0
  %185 = vmatpush.msra.mxu0 0.0
  %186 = vmatpush.msra.mxu0 0.0
  %187 = vmatpush.msra.mxu0 0.0
  %188 = vmatpush.msra.mxu0 0.0
  %189 = vmatpush.msra.mxu0 0.0
  %190 = vmatpush.msra.mxu0 0.0
  %191 = vmatpush.msra.mxu0 0.0
  %v192 = vand.u32 %v60, 4294901760
  %v193 = vsub.f32 %v60, %v192
  %v194 = vand.u32 %v193, 4294901760
  %195 = vmatpush.msra.mxu0 %v194
  %v196 = vand.u32 %v59, 4294901760
  %v197 = vsub.f32 %v59, %v196
  %v198 = vand.u32 %v197, 4294901760
  %199 = vmatpush.msra.mxu0 %v198
  %v200 = vand.u32 %v67, 4294901760
  %201 = vmatmul.f32.gmra.mxu0 %v200
  %v202 = vpop.f32.mrf.mxu0
  %v203 = vadd.f32 %v176, %v202
  %204 = vdwg.mxu0
  %205 = vmatpush.msra.mxu0 0.0
  %206 = vmatpush.msra.mxu0 0.0
  %207 = vmatpush.msra.mxu0 0.0
  %208 = vmatpush.msra.mxu0 0.0
  %209 = vmatpush.msra.mxu0 0.0
  %210 = vmatpush.msra.mxu0 0.0
  %211 = vmatpush.msra.mxu0 0.0
  %212 = vmatpush.msra.mxu0 0.0
  %213 = vmatpush.msra.mxu0 0.0
  %214 = vmatpush.msra.mxu0 0.0
  %215 = vmatpush.msra.mxu0 0.0
  %216 = vmatpush.msra.mxu0 0.0
  %217 = vmatpush.msra.mxu0 0.0
  %218 = vmatpush.msra.mxu0 0.0
  %v219 = vand.u32 %v60, 4294901760
  %220 = vmatpush.msra.mxu0 %v219
  %v221 = vand.u32 %v59, 4294901760
  %222 = vmatpush.msra.mxu0 %v221
  %v223 = vand.u32 %v67, 4294901760
  %224 = vmatmul.f32.gmra.mxu0 %v223
  %v225 = vpop.f32.mrf.mxu0
  %v226 = vadd.f32 %v203, %v225
  %227 = vdwg.mxu0
  %v229 = vrot.slane %v226, 2
  %230 = vrot.lane.b32.xlu0 %v229, 16
  %v231 = vpop.permute.xlu0 %230
  %v233 = vrot.slane %v226, 4
  %234 = vrot.lane.b32.xlu0 %v233, 32
  %v235 = vpop.permute.xlu0 %234
  %v237 = vsel %vm65, %v226, %v231
  %vm238 = vcmask 261120
  %v239 = vsel %vm238, %v237, %v235
  %240 = vst.msk [vmem:[%s3] sm:$0x3] %vm42, %v239
  // Predicated region
  $region14: #{linear_model_forward.1} parent=0 // pred_check
    _
  $region15: #{linear_model_forward.1} parent=0 // pred_check_branch
    %242 = sbr.rel (0) target = $region17
  $region16: #{linear_model_forward.1} parent=0 // pred_region
    _
  $region17: #{linear_model_forward.1} parent=0 // pred_fallthru
    _
  // Predicated region
  $region18: #{linear_model_forward.1} parent=0 // pred_check
    _
  $region19: #{linear_model_forward.1} parent=0 // pred_check_branch
    %244 = sbr.rel (0) target = $region21
  $region20: #{linear_model_forward.1} parent=0 // pred_region
    _
  $region21: #{linear_model_forward.1} parent=0 // pred_fallthru
    _
  // Predicated region
  $region22: #{linear_model_forward.1} parent=0 // pred_check
    _
  $region23: #{linear_model_forward.1} parent=0 // pred_check_branch
    %246 = sbr.rel (0) target = $region25
  $region24: #{linear_model_forward.1} parent=0 // pred_region
    _
  $region25: #{linear_model_forward.1} parent=0 // pred_fallthru
    _
  // Predicated region
  $region26: #{linear_model_forward.1} parent=0 // pred_check
    _
  $region27: #{linear_model_forward.1} parent=0 // pred_check_branch
    %248 = sbr.rel (0) target = $region29
  $region28: #{linear_model_forward.1} parent=0 // pred_region
    _
  $region29: #{linear_model_forward.1} parent=0 // pred_fallthru
    _

</llo_original>
